<compile_context>
chip_gen: v7x
topology: tpu7x:2x2x1
jax: 0.10.0
libtpu: 0.0.40
codegen_flags: <defaults>
</compile_context>

<pallas_src>
import functools

import jax
import jax.numpy as jnp
from jax import lax
from jax.experimental import pallas as pl
from jax.experimental.pallas import tpu as pltpu


def _round_up(x, m):
    return ((x + m - 1) // m) * m


# f32-equivalent bytes of x per block (intermediates are f32, so budget in f32
# units regardless of input dtype to keep the VMEM working set bounded).
_BLOCK_F32_BYTES = 4 * 1024 * 1024
_VMEM_LIMIT_BYTES = 40 * 1024 * 1024


def _gdn_kernel_packed(x_ref, gamma_ref, beta_ref, o_ref, *, inverse, channels):
    """Small-C path. x_ref/o_ref: (1, C, t_s, 128). gamma (C,C) / beta (C,) in SMEM.

    Spatial is packed into (sublane, lane) = (t_s, 128), so every vreg is dense
    even for C=4.  gamma/beta are read as SMEM scalars and splatted (scalar slot
    + one vsplat per use) -> no lane/sublane broadcasts of parameter columns.
    """
    x = x_ref[0].astype(jnp.float32)          # (C, t_s, 128)
    x2 = x * x
    for co in range(channels):
        acc = x2[0] * gamma_ref[co, 0]
        for ci in range(1, channels):
            acc = acc + x2[ci] * gamma_ref[co, ci]
        denom_sq = acc + beta_ref[co]          # (t_s, 128)
        if inverse:
            out_co = x[co] * jnp.sqrt(denom_sq)
        else:
            out_co = x[co] * lax.rsqrt(denom_sq)   # EUP rsqrt + VPU mul
        o_ref[0, co] = out_co.astype(o_ref.dtype)


def _gdn_kernel_lanes(x_ref, gamma_ref, beta_ref, o_ref, *, inverse, channels,
                      use_mxu):
    """General path. x_ref/o_ref: (1, C, t_hw); gamma: (C, C); beta: (C, 1) in VMEM."""
    x = x_ref[0].astype(jnp.float32)          # (C, t_hw), lanes = spatial
    x2 = x * x
    g = gamma_ref[...].astype(jnp.float32)    # (C, C)
    b = beta_ref[...].astype(jnp.float32)     # (C, 1), broadcasts along lanes

    if use_mxu:
        # C > 8: channel mix on the MXU (free vs. HBM); HIGHEST precision so the
        # f32 result matches the reference at tight tolerances.
        norm = jnp.dot(g, x2, preferred_element_type=jnp.float32,
                       precision=lax.Precision.HIGHEST)
    else:
        # Fallback for small C with ragged H*W (rare): unrolled VPU FMAs.
        acc = g[:, 0:1] * x2[0:1, :]
        for ci in range(1, channels):
            acc = acc + g[:, ci:ci + 1] * x2[ci:ci + 1, :]
        norm = acc

    denom_sq = norm + b                       # (C, t_hw)
    if inverse:
        out = x * jnp.sqrt(denom_sq)
    else:
        out = x * lax.rsqrt(denom_sq)
    o_ref[0] = out.astype(o_ref.dtype)


def gdn_pallas(x_nchw, gamma, beta, *, inverse=False, spatial_block=None):
    """x_nchw: (N, C, H, W); gamma: (C, C, 1, 1); beta: (1, C, 1, 1).

    spatial_block (optional): override of the spatial tile size in H*W elements
    (rounded to hardware alignment); mainly useful for testing edge blocks.
    """
    n, c, h, w = x_nchw.shape
    hw = h * w
    dt = x_nchw.dtype

    gamma_mat = gamma.reshape(c, c).astype(jnp.float32)

    flops = int(2.0 * n * hw * c * c + 4.0 * n * c * hw)
    cost = pl.CostEstimate(
        flops=flops,
        transcendentals=int(n * c * hw),
        bytes_accessed=int(2 * n * c * hw * jnp.dtype(dt).itemsize
                           + (c * c + c) * 4),
    )
    cparams = pltpu.CompilerParams(
        dimension_semantics=("parallel", "parallel"),   # megacore-shardable
        vmem_limit_bytes=_VMEM_LIMIT_BYTES,
    )

    use_packed = (c <= 8) and (hw % 128 == 0) and (hw >= 128)

    if use_packed:
        # ---- small-C, dense-sublane path: x viewed as (N, C, HW/128, 128) ----
        s_total = hw // 128
        x4 = x_nchw.reshape(n, c, s_total, 128)         # free bitcast reshape
        beta_vec = beta.reshape(c).astype(jnp.float32)

        if spatial_block is not None:
            t_s = max(8, (spatial_block // 128) // 8 * 8)
        else:
            budget_s = max(8, (_BLOCK_F32_BYTES // (4 * c * 128)) // 8 * 8)
            num_tiles = pl.cdiv(s_total, budget_s)
            t_s = _round_up(pl.cdiv(s_total, num_tiles), 8)
        if t_s >= s_total:
            t_s = s_total                                 # single full block (legal)
        if (spatial_block is None and n == 1
                and pl.cdiv(s_total, t_s) == 1 and s_total >= 16):
            # Megacore guard: give the second TensorCore something to do.
            t_s = _round_up(pl.cdiv(s_total, 2), 8)
        num_tiles = pl.cdiv(s_total, t_s)
        grid = (n, num_tiles)

        kernel = functools.partial(_gdn_kernel_packed, inverse=inverse, channels=c)
        out4 = pl.pallas_call(
            kernel,
            out_shape=jax.ShapeDtypeStruct((n, c, s_total, 128), dt),
            grid_spec=pltpu.PrefetchScalarGridSpec(
                num_scalar_prefetch=0,
                grid=grid,
                in_specs=[
                    pl.BlockSpec((1, c, t_s, 128), lambda i, j: (i, 0, j, 0)),
                    pl.BlockSpec(memory_space=pltpu.MemorySpace.SMEM),  # gamma
                    pl.BlockSpec(memory_space=pltpu.MemorySpace.SMEM),  # beta
                ],
                out_specs=pl.BlockSpec((1, c, t_s, 128), lambda i, j: (i, 0, j, 0)),
            ),
            compiler_params=cparams,
            cost_estimate=cost,
        )(x4, gamma_mat, beta_vec)
        return out4.reshape(n, c, h, w)

    # ---- general path: x viewed as (N, C, H*W), spatial on lanes ----
    x3 = x_nchw.reshape(n, c, hw)                        # free reshape
    beta_col = beta.reshape(c, 1).astype(jnp.float32)

    if spatial_block is not None:
        t_hw = max(128, (spatial_block // 128) * 128)
    else:
        budget_hw = max(128, (_BLOCK_F32_BYTES // (4 * c)) // 128 * 128)
        num_tiles = pl.cdiv(hw, budget_hw)
        t_hw = _round_up(pl.cdiv(hw, num_tiles), 128)
    if t_hw >= hw:
        t_hw = hw                                         # single full block (legal)
    if (spatial_block is None and n == 1
            and pl.cdiv(hw, t_hw) == 1 and hw > 256):
        t_hw = _round_up(pl.cdiv(hw, 2), 128)             # megacore guard
    num_tiles = pl.cdiv(hw, t_hw)                         # edge block if ragged
    grid = (n, num_tiles)

    kernel = functools.partial(_gdn_kernel_lanes, inverse=inverse, channels=c,
                               use_mxu=(c > 8))
    out3 = pl.pallas_call(
        kernel,
        out_shape=jax.ShapeDtypeStruct((n, c, hw), dt),
        grid_spec=pltpu.PrefetchScalarGridSpec(
            num_scalar_prefetch=0,
            grid=grid,
            in_specs=[
                pl.BlockSpec((1, c, t_hw), lambda i, j: (i, 0, j)),
                pl.BlockSpec((c, c), lambda i, j: (0, 0)),   # resident across grid
                pl.BlockSpec((c, 1), lambda i, j: (0, 0)),   # resident across grid
            ],
            out_specs=pl.BlockSpec((1, c, t_hw), lambda i, j: (i, 0, j)),
        ),
        compiler_params=cparams,
        cost_estimate=cost,
    )(x3, gamma_mat, beta_col)
    return out3.reshape(n, c, h, w)


def gdn_reference(x_nchw, gamma, beta, *, inverse=False):
    """Pure-JAX reference mirroring the PyTorch forward (full-f32 precision)."""
    c = x_nchw.shape[1]
    g = gamma.reshape(c, c).astype(jnp.float32)
    x_f32 = x_nchw.astype(jnp.float32)
    norm = jnp.einsum("oc,nchw->nohw", g, x_f32 * x_f32,
                      precision=jax.lax.Precision.HIGHEST)
    denom = jnp.sqrt(beta.astype(jnp.float32) + norm)
    if inverse:
        return (x_f32 * denom).astype(x_nchw.dtype)
    return (x_f32 / denom).astype(x_nchw.dtype)


def _make_params(key, c):
    # Module init: beta = ones, gamma = eye; add a small deterministic
    # non-negative perturbation so cross-channel mixing is exercised.
    beta = jnp.ones((1, c, 1, 1), dtype=jnp.float32)
    gamma = jnp.eye(c, dtype=jnp.float32).reshape(c, c, 1, 1)
    gamma = gamma + 0.01 * jnp.abs(
        jax.random.normal(key, (c, c, 1, 1), dtype=jnp.float32))
    return gamma, beta


if __name__ == "__main__":
    key = jax.random.PRNGKey(0)
    k1, k2, k3, k4 = jax.random.split(key, 4)

    ok = True

    # Test A: small-C packed-sublane path (N=2, C=4, 16x16), forward + inverse.
    N, C, H, W = 2, 4, 16, 16
    x = jax.random.normal(k1, (N, C, H, W), dtype=jnp.float32)
    gamma, beta = _make_params(k2, C)
    out = jax.block_until_ready(gdn_pallas(x, gamma, beta, inverse=False))
    out_inv = jax.block_until_ready(gdn_pallas(x, gamma, beta, inverse=True))
    ok &= bool(jnp.allclose(out, gdn_reference(x, gamma, beta, inverse=False),
                            atol=1e-5, rtol=1e-5))
    ok &= bool(jnp.allclose(out_inv, gdn_reference(x, gamma, beta, inverse=True),
                            atol=1e-5, rtol=1e-5))

    # Test B: MXU path (C=16 > 8) with a ragged spatial extent and forced small
    # tile so edge-block masking is exercised (400 = 3*128 + 16).
    N2, C2, H2, W2 = 2, 16, 20, 20
    x2 = jax.random.normal(k3, (N2, C2, H2, W2), dtype=jnp.float32)
    gamma2, beta2 = _make_params(k4, C2)
    out2 = jax.block_until_ready(
        gdn_pallas(x2, gamma2, beta2, inverse=False, spatial_block=128))
    ok &= bool(jnp.allclose(out2, gdn_reference(x2, gamma2, beta2, inverse=False),
                            atol=1e-5, rtol=1e-5))

    # Test C: small-C lanes fallback (H*W=400 not a multiple of 128) with a
    # forced tile that leaves a ragged edge block (400 = 256 + 144).
    x3 = jax.random.normal(k3, (N, C, 20, 20), dtype=jnp.float32)
    out3 = jax.block_until_ready(
        gdn_pallas(x3, gamma, beta, inverse=False, spatial_block=256))
    ok &= bool(jnp.allclose(out3, gdn_reference(x3, gamma, beta, inverse=False),
                            atol=1e-5, rtol=1e-5))

    assert ok, "GDN Pallas kernel mismatch vs reference"
    print("KERNEL_OK")
</pallas_src>

<mosaic_0001>
module attributes {stable_mosaic.version = 11 : i64} {
  func.func @_gdn_kernel_packed(%arg0: i32, %arg1: i32, %arg2: memref<1x4x2x128xf32, #tpu.memory_space<vmem>>, %arg3: memref<4x4xf32, #tpu.memory_space<smem>>, %arg4: memref<4xf32, #tpu.memory_space<smem>>, %arg5: memref<1x4x2x128xf32, #tpu.memory_space<vmem>>) attributes {dimension_semantics = [#tpu.dimension_semantics<parallel>, #tpu.dimension_semantics<parallel>], iteration_bounds = array<i64: 2, 1>, scalar_prefetch = 0 : i64, scratch_operands = 0 : i64, tpu.core_type = #tpu.core_type<tc>, window_params = [{transform_indices = @transform_0, window_bounds = array<i64: 1, 4, 2, 128>}, {transform_indices = @transform_1, window_bounds = array<i64: 4, 4>}, {transform_indices = @transform_2, window_bounds = array<i64: 4>}, {transform_indices = @transform_3, window_bounds = array<i64: 1, 4, 2, 128>}]} {
    %c0 = arith.constant 0 : index
    %c0_0 = arith.constant 0 : index
    %c0_1 = arith.constant 0 : index
    %c0_2 = arith.constant 0 : index
    %0 = vector.load %arg2[%c0, %c0_0, %c0_1, %c0_2] : memref<1x4x2x128xf32, #tpu.memory_space<vmem>>, vector<1x4x2x128xf32>
    %1 = vector.shape_cast %0 : vector<1x4x2x128xf32> to vector<4x2x128xf32>
    %2 = arith.mulf %1, %1 : vector<4x2x128xf32>
    %3 = vector.extract_strided_slice %2 {offsets = [0, 0, 0], sizes = [1, 2, 128], strides = [1, 1, 1]} : vector<4x2x128xf32> to vector<1x2x128xf32>
    %4 = vector.shape_cast %3 : vector<1x2x128xf32> to vector<2x128xf32>
    %c0_3 = arith.constant 0 : index
    %c0_4 = arith.constant 0 : index
    %5 = memref.load %arg3[%c0_3, %c0_4] : memref<4x4xf32, #tpu.memory_space<smem>>
    %6 = vector.broadcast %5 : f32 to vector<2x128xf32>
    %7 = arith.mulf %4, %6 : vector<2x128xf32>
    %8 = vector.extract_strided_slice %2 {offsets = [1, 0, 0], sizes = [1, 2, 128], strides = [1, 1, 1]} : vector<4x2x128xf32> to vector<1x2x128xf32>
    %9 = vector.shape_cast %8 : vector<1x2x128xf32> to vector<2x128xf32>
    %c0_5 = arith.constant 0 : index
    %c1 = arith.constant 1 : index
    %10 = memref.load %arg3[%c0_5, %c1] : memref<4x4xf32, #tpu.memory_space<smem>>
    %11 = vector.broadcast %10 : f32 to vector<2x128xf32>
    %12 = arith.mulf %9, %11 : vector<2x128xf32>
    %13 = arith.addf %7, %12 : vector<2x128xf32>
    %14 = vector.extract_strided_slice %2 {offsets = [2, 0, 0], sizes = [1, 2, 128], strides = [1, 1, 1]} : vector<4x2x128xf32> to vector<1x2x128xf32>
    %15 = vector.shape_cast %14 : vector<1x2x128xf32> to vector<2x128xf32>
    %c0_6 = arith.constant 0 : index
    %c2 = arith.constant 2 : index
    %16 = memref.load %arg3[%c0_6, %c2] : memref<4x4xf32, #tpu.memory_space<smem>>
    %17 = vector.broadcast %16 : f32 to vector<2x128xf32>
    %18 = arith.mulf %15, %17 : vector<2x128xf32>
    %19 = arith.addf %13, %18 : vector<2x128xf32>
    %20 = vector.extract_strided_slice %2 {offsets = [3, 0, 0], sizes = [1, 2, 128], strides = [1, 1, 1]} : vector<4x2x128xf32> to vector<1x2x128xf32>
    %21 = vector.shape_cast %20 : vector<1x2x128xf32> to vector<2x128xf32>
    %c0_7 = arith.constant 0 : index
    %c3 = arith.constant 3 : index
    %22 = memref.load %arg3[%c0_7, %c3] : memref<4x4xf32, #tpu.memory_space<smem>>
    %23 = vector.broadcast %22 : f32 to vector<2x128xf32>
    %24 = arith.mulf %21, %23 : vector<2x128xf32>
    %25 = arith.addf %19, %24 : vector<2x128xf32>
    %c0_8 = arith.constant 0 : index
    %26 = memref.load %arg4[%c0_8] : memref<4xf32, #tpu.memory_space<smem>>
    %27 = vector.broadcast %26 : f32 to vector<2x128xf32>
    %28 = arith.addf %25, %27 : vector<2x128xf32>
    %29 = vector.extract_strided_slice %1 {offsets = [0, 0, 0], sizes = [1, 2, 128], strides = [1, 1, 1]} : vector<4x2x128xf32> to vector<1x2x128xf32>
    %30 = vector.shape_cast %29 : vector<1x2x128xf32> to vector<2x128xf32>
    %31 = math.rsqrt %28 : vector<2x128xf32>
    %32 = arith.mulf %30, %31 : vector<2x128xf32>
    %c0_9 = arith.constant 0 : index
    %c0_10 = arith.constant 0 : index
    %c0_11 = arith.constant 0 : index
    %c0_12 = arith.constant 0 : index
    %33 = vector.load %arg5[%c0_9, %c0_10, %c0_11, %c0_12] : memref<1x4x2x128xf32, #tpu.memory_space<vmem>>, vector<1x1x2x128xf32>
    %34 = vector.shape_cast %33 : vector<1x1x2x128xf32> to vector<2x128xf32>
    %35 = vector.shape_cast %32 : vector<2x128xf32> to vector<1x1x2x128xf32>
    tpu.vector_store %arg5[%c0_9, %c0_10, %c0_11, %c0_12], %35 {strides = array<i32>} : memref<1x4x2x128xf32, #tpu.memory_space<vmem>>, vector<1x1x2x128xf32>,
    %36 = vector.extract_strided_slice %2 {offsets = [0, 0, 0], sizes = [1, 2, 128], strides = [1, 1, 1]} : vector<4x2x128xf32> to vector<1x2x128xf32>
    %37 = vector.shape_cast %36 : vector<1x2x128xf32> to vector<2x128xf32>
    %c1_13 = arith.constant 1 : index
    %c0_14 = arith.constant 0 : index
    %38 = memref.load %arg3[%c1_13, %c0_14] : memref<4x4xf32, #tpu.memory_space<smem>>
    %39 = vector.broadcast %38 : f32 to vector<2x128xf32>
    %40 = arith.mulf %37, %39 : vector<2x128xf32>
    %41 = vector.extract_strided_slice %2 {offsets = [1, 0, 0], sizes = [1, 2, 128], strides = [1, 1, 1]} : vector<4x2x128xf32> to vector<1x2x128xf32>
    %42 = vector.shape_cast %41 : vector<1x2x128xf32> to vector<2x128xf32>
    %c1_15 = arith.constant 1 : index
    %c1_16 = arith.constant 1 : index
    %43 = memref.load %arg3[%c1_15, %c1_16] : memref<4x4xf32, #tpu.memory_space<smem>>
    %44 = vector.broadcast %43 : f32 to vector<2x128xf32>
    %45 = arith.mulf %42, %44 : vector<2x128xf32>
    %46 = arith.addf %40, %45 : vector<2x128xf32>
    %47 = vector.extract_strided_slice %2 {offsets = [2, 0, 0], sizes = [1, 2, 128], strides = [1, 1, 1]} : vector<4x2x128xf32> to vector<1x2x128xf32>
    %48 = vector.shape_cast %47 : vector<1x2x128xf32> to vector<2x128xf32>
    %c1_17 = arith.constant 1 : index
    %c2_18 = arith.constant 2 : index
    %49 = memref.load %arg3[%c1_17, %c2_18] : memref<4x4xf32, #tpu.memory_space<smem>>
    %50 = vector.broadcast %49 : f32 to vector<2x128xf32>
    %51 = arith.mulf %48, %50 : vector<2x128xf32>
    %52 = arith.addf %46, %51 : vector<2x128xf32>
    %53 = vector.extract_strided_slice %2 {offsets = [3, 0, 0], sizes = [1, 2, 128], strides = [1, 1, 1]} : vector<4x2x128xf32> to vector<1x2x128xf32>
    %54 = vector.shape_cast %53 : vector<1x2x128xf32> to vector<2x128xf32>
    %c1_19 = arith.constant 1 : index
    %c3_20 = arith.constant 3 : index
    %55 = memref.load %arg3[%c1_19, %c3_20] : memref<4x4xf32, #tpu.memory_space<smem>>
    %56 = vector.broadcast %55 : f32 to vector<2x128xf32>
    %57 = arith.mulf %54, %56 : vector<2x128xf32>
    %58 = arith.addf %52, %57 : vector<2x128xf32>
    %c1_21 = arith.constant 1 : index
    %59 = memref.load %arg4[%c1_21] : memref<4xf32, #tpu.memory_space<smem>>
    %60 = vector.broadcast %59 : f32 to vector<2x128xf32>
    %61 = arith.addf %58, %60 : vector<2x128xf32>
    %62 = vector.extract_strided_slice %1 {offsets = [1, 0, 0], sizes = [1, 2, 128], strides = [1, 1, 1]} : vector<4x2x128xf32> to vector<1x2x128xf32>
    %63 = vector.shape_cast %62 : vector<1x2x128xf32> to vector<2x128xf32>
    %64 = math.rsqrt %61 : vector<2x128xf32>
    %65 = arith.mulf %63, %64 : vector<2x128xf32>
    %c0_22 = arith.constant 0 : index
    %c1_23 = arith.constant 1 : index
    %c0_24 = arith.constant 0 : index
    %c0_25 = arith.constant 0 : index
    %66 = vector.load %arg5[%c0_22, %c1_23, %c0_24, %c0_25] : memref<1x4x2x128xf32, #tpu.memory_space<vmem>>, vector<1x1x2x128xf32>
    %67 = vector.shape_cast %66 : vector<1x1x2x128xf32> to vector<2x128xf32>
    %68 = vector.shape_cast %65 : vector<2x128xf32> to vector<1x1x2x128xf32>
    tpu.vector_store %arg5[%c0_22, %c1_23, %c0_24, %c0_25], %68 {strides = array<i32>} : memref<1x4x2x128xf32, #tpu.memory_space<vmem>>, vector<1x1x2x128xf32>,
    %69 = vector.extract_strided_slice %2 {offsets = [0, 0, 0], sizes = [1, 2, 128], strides = [1, 1, 1]} : vector<4x2x128xf32> to vector<1x2x128xf32>
    %70 = vector.shape_cast %69 : vector<1x2x128xf32> to vector<2x128xf32>
    %c2_26 = arith.constant 2 : index
    %c0_27 = arith.constant 0 : index
    %71 = memref.load %arg3[%c2_26, %c0_27] : memref<4x4xf32, #tpu.memory_space<smem>>
    %72 = vector.broadcast %71 : f32 to vector<2x128xf32>
    %73 = arith.mulf %70, %72 : vector<2x128xf32>
    %74 = vector.extract_strided_slice %2 {offsets = [1, 0, 0], sizes = [1, 2, 128], strides = [1, 1, 1]} : vector<4x2x128xf32> to vector<1x2x128xf32>
    %75 = vector.shape_cast %74 : vector<1x2x128xf32> to vector<2x128xf32>
    %c2_28 = arith.constant 2 : index
    %c1_29 = arith.constant 1 : index
    %76 = memref.load %arg3[%c2_28, %c1_29] : memref<4x4xf32, #tpu.memory_space<smem>>
    %77 = vector.broadcast %76 : f32 to vector<2x128xf32>
    %78 = arith.mulf %75, %77 : vector<2x128xf32>
    %79 = arith.addf %73, %78 : vector<2x128xf32>
    %80 = vector.extract_strided_slice %2 {offsets = [2, 0, 0], sizes = [1, 2, 128], strides = [1, 1, 1]} : vector<4x2x128xf32> to vector<1x2x128xf32>
    %81 = vector.shape_cast %80 : vector<1x2x128xf32> to vector<2x128xf32>
    %c2_30 = arith.constant 2 : index
    %c2_31 = arith.constant 2 : index
    %82 = memref.load %arg3[%c2_30, %c2_31] : memref<4x4xf32, #tpu.memory_space<smem>>
    %83 = vector.broadcast %82 : f32 to vector<2x128xf32>
    %84 = arith.mulf %81, %83 : vector<2x128xf32>
    %85 = arith.addf %79, %84 : vector<2x128xf32>
    %86 = vector.extract_strided_slice %2 {offsets = [3, 0, 0], sizes = [1, 2, 128], strides = [1, 1, 1]} : vector<4x2x128xf32> to vector<1x2x128xf32>
    %87 = vector.shape_cast %86 : vector<1x2x128xf32> to vector<2x128xf32>
    %c2_32 = arith.constant 2 : index
    %c3_33 = arith.constant 3 : index
    %88 = memref.load %arg3[%c2_32, %c3_33] : memref<4x4xf32, #tpu.memory_space<smem>>
    %89 = vector.broadcast %88 : f32 to vector<2x128xf32>
    %90 = arith.mulf %87, %89 : vector<2x128xf32>
    %91 = arith.addf %85, %90 : vector<2x128xf32>
    %c2_34 = arith.constant 2 : index
    %92 = memref.load %arg4[%c2_34] : memref<4xf32, #tpu.memory_space<smem>>
    %93 = vector.broadcast %92 : f32 to vector<2x128xf32>
    %94 = arith.addf %91, %93 : vector<2x128xf32>
    %95 = vector.extract_strided_slice %1 {offsets = [2, 0, 0], sizes = [1, 2, 128], strides = [1, 1, 1]} : vector<4x2x128xf32> to vector<1x2x128xf32>
    %96 = vector.shape_cast %95 : vector<1x2x128xf32> to vector<2x128xf32>
    %97 = math.rsqrt %94 : vector<2x128xf32>
    %98 = arith.mulf %96, %97 : vector<2x128xf32>
    %c0_35 = arith.constant 0 : index
    %c2_36 = arith.constant 2 : index
    %c0_37 = arith.constant 0 : index
    %c0_38 = arith.constant 0 : index
    %99 = vector.load %arg5[%c0_35, %c2_36, %c0_37, %c0_38] : memref<1x4x2x128xf32, #tpu.memory_space<vmem>>, vector<1x1x2x128xf32>
    %100 = vector.shape_cast %99 : vector<1x1x2x128xf32> to vector<2x128xf32>
    %101 = vector.shape_cast %98 : vector<2x128xf32> to vector<1x1x2x128xf32>
    tpu.vector_store %arg5[%c0_35, %c2_36, %c0_37, %c0_38], %101 {strides = array<i32>} : memref<1x4x2x128xf32, #tpu.memory_space<vmem>>, vector<1x1x2x128xf32>,
    %102 = vector.extract_strided_slice %2 {offsets = [0, 0, 0], sizes = [1, 2, 128], strides = [1, 1, 1]} : vector<4x2x128xf32> to vector<1x2x128xf32>
    %103 = vector.shape_cast %102 : vector<1x2x128xf32> to vector<2x128xf32>
    %c3_39 = arith.constant 3 : index
    %c0_40 = arith.constant 0 : index
    %104 = memref.load %arg3[%c3_39, %c0_40] : memref<4x4xf32, #tpu.memory_space<smem>>
    %105 = vector.broadcast %104 : f32 to vector<2x128xf32>
    %106 = arith.mulf %103, %105 : vector<2x128xf32>
    %107 = vector.extract_strided_slice %2 {offsets = [1, 0, 0], sizes = [1, 2, 128], strides = [1, 1, 1]} : vector<4x2x128xf32> to vector<1x2x128xf32>
    %108 = vector.shape_cast %107 : vector<1x2x128xf32> to vector<2x128xf32>
    %c3_41 = arith.constant 3 : index
    %c1_42 = arith.constant 1 : index
    %109 = memref.load %arg3[%c3_41, %c1_42] : memref<4x4xf32, #tpu.memory_space<smem>>
    %110 = vector.broadcast %109 : f32 to vector<2x128xf32>
    %111 = arith.mulf %108, %110 : vector<2x128xf32>
    %112 = arith.addf %106, %111 : vector<2x128xf32>
    %113 = vector.extract_strided_slice %2 {offsets = [2, 0, 0], sizes = [1, 2, 128], strides = [1, 1, 1]} : vector<4x2x128xf32> to vector<1x2x128xf32>
    %114 = vector.shape_cast %113 : vector<1x2x128xf32> to vector<2x128xf32>
    %c3_43 = arith.constant 3 : index
    %c2_44 = arith.constant 2 : index
    %115 = memref.load %arg3[%c3_43, %c2_44] : memref<4x4xf32, #tpu.memory_space<smem>>
    %116 = vector.broadcast %115 : f32 to vector<2x128xf32>
    %117 = arith.mulf %114, %116 : vector<2x128xf32>
    %118 = arith.addf %112, %117 : vector<2x128xf32>
    %119 = vector.extract_strided_slice %2 {offsets = [3, 0, 0], sizes = [1, 2, 128], strides = [1, 1, 1]} : vector<4x2x128xf32> to vector<1x2x128xf32>
    %120 = vector.shape_cast %119 : vector<1x2x128xf32> to vector<2x128xf32>
    %c3_45 = arith.constant 3 : index
    %c3_46 = arith.constant 3 : index
    %121 = memref.load %arg3[%c3_45, %c3_46] : memref<4x4xf32, #tpu.memory_space<smem>>
    %122 = vector.broadcast %121 : f32 to vector<2x128xf32>
    %123 = arith.mulf %120, %122 : vector<2x128xf32>
    %124 = arith.addf %118, %123 : vector<2x128xf32>
    %c3_47 = arith.constant 3 : index
    %125 = memref.load %arg4[%c3_47] : memref<4xf32, #tpu.memory_space<smem>>
    %126 = vector.broadcast %125 : f32 to vector<2x128xf32>
    %127 = arith.addf %124, %126 : vector<2x128xf32>
    %128 = vector.extract_strided_slice %1 {offsets = [3, 0, 0], sizes = [1, 2, 128], strides = [1, 1, 1]} : vector<4x2x128xf32> to vector<1x2x128xf32>
    %129 = vector.shape_cast %128 : vector<1x2x128xf32> to vector<2x128xf32>
    %130 = math.rsqrt %127 : vector<2x128xf32>
    %131 = arith.mulf %129, %130 : vector<2x128xf32>
    %c0_48 = arith.constant 0 : index
    %c3_49 = arith.constant 3 : index
    %c0_50 = arith.constant 0 : index
    %c0_51 = arith.constant 0 : index
    %132 = vector.load %arg5[%c0_48, %c3_49, %c0_50, %c0_51] : memref<1x4x2x128xf32, #tpu.memory_space<vmem>>, vector<1x1x2x128xf32>
    %133 = vector.shape_cast %132 : vector<1x1x2x128xf32> to vector<2x128xf32>
    %134 = vector.shape_cast %131 : vector<2x128xf32> to vector<1x1x2x128xf32>
    tpu.vector_store %arg5[%c0_48, %c3_49, %c0_50, %c0_51], %134 {strides = array<i32>} : memref<1x4x2x128xf32, #tpu.memory_space<vmem>>, vector<1x1x2x128xf32>,
    return
  }
  func.func @transform_0(%arg0: i32, %arg1: i32) -> (i32, i32, i32, i32) {
    %c0_i32 = arith.constant 0 : i32
    %c0_i32_0 = arith.constant 0 : i32
    %c0_i32_1 = arith.constant 0 : i32
    return %arg0, %c0_i32, %arg1, %c0_i32_0 : i32, i32, i32, i32
  }
  func.func @transform_1(%arg0: i32, %arg1: i32) -> (i32, i32) {
    %c0_i32 = arith.constant 0 : i32
    %c0_i32_0 = arith.constant 0 : i32
    %c0_i32_1 = arith.constant 0 : i32
    return %c0_i32, %c0_i32_0 : i32, i32
  }
  func.func @transform_2(%arg0: i32, %arg1: i32) -> i32 {
    %c0_i32 = arith.constant 0 : i32
    %c0_i32_0 = arith.constant 0 : i32
    return %c0_i32 : i32
  }
  func.func @transform_3(%arg0: i32, %arg1: i32) -> (i32, i32, i32, i32) {
    %c0_i32 = arith.constant 0 : i32
    %c0_i32_0 = arith.constant 0 : i32
    %c0_i32_1 = arith.constant 0 : i32
    return %arg0, %c0_i32, %arg1, %c0_i32_0 : i32, i32, i32, i32
  }
}

</mosaic_0001>

<llo_original>
// kernel: tpu_custom_call.1
$region0: #{tpu_custom_call.1}
  #allocation0 [shape = 'u32[]', space=smem, size = 0x4, offset = 0x4, fixed_abs, tag = 'smem constant byte address 0x4 - core index']
  #allocation1 [shape = 'u32[144,128]{1,0:T(1,128)}', space=vmem, size = 0x12000, scoped, tag = 'internal scratch']
  %s0 = inlined_call_operand.hbm [shape: f32[2,4,2,128], index: 0, kind: input, shape index: {}]
  %s1 = inlined_call_operand.hbm [shape: f32[4,4], index: 1, kind: input, shape index: {}]
  %s2 = inlined_call_operand.vmem [shape: f32[4], index: 2, kind: input, shape index: {}]
  %s3 = inlined_call_operand.hbm [shape: f32[2,4,2,128], index: 3, kind: output, shape index: {}]
  %s4 = sld [smem:[#allocation0]]
  $region57: #{tpu_custom_call.1} parent=0
    _
  %s6 = ssub.s32 1, %s4
  %s7 = scalar_select 0, %s6, %s4
  $region1: #{tpu_custom_call.1} parent=0
    #allocation2 [shape = 'u8[8192]{0}', space=vmem, size = 0x2000, scoped, tag = 'input window, operand 0']
    #allocation3 [shape = 's32[2]{0}', space=sflag, size = 0x8, scoped, tag = 'scoped memory for tpu_custom_call.1']
    #allocation4 [shape = 's32[2]{0}', space=sflag, size = 0x8, scoped, tag = 'scoped memory for tpu_custom_call.1']
    #allocation5 [shape = 's32[2]{0}', space=sflag, size = 0x8, scoped, tag = 'scoped memory for tpu_custom_call.1']
    #allocation6 [shape = 's32[2]{0}', space=sflag, size = 0x8, scoped, tag = 'scoped memory for tpu_custom_call.1']
    #allocation7 [shape = 'u8[2048]{0}', space=smem, size = 0x800, scoped, tag = 'input window, operand 1, single buffered']
    #allocation8 [shape = 'u8[512]{0}', space=smem, size = 0x200, scoped, tag = 'input window, operand 2, single buffered']
    #allocation9 [shape = 'u8[8192]{0}', space=vmem, size = 0x2000, scoped, tag = 'output window, operand 0']
    %8 = vsyncpa [#allocation3], 0
    %s9 = scalar_lea.sflag [#allocation3], 1
    %10 = vsyncpa %s9, 0
    %11 = vsyncpa [#allocation5], 0
    %12 = vsyncpa [#allocation6], 0
    %13 = vsyncpa [#allocation4], 0
    %s14 = scalar_lea.sflag [#allocation4], 1
    %15 = vsyncpa %s14, 0
    loop: start=0, step=1, limit=4
    $region2: #{tpu_custom_call.1} parent=1 // loop_pre_header
      _
    $region3: #{tpu_custom_call.1} parent=1 // loop_header
      %s17 = sphi 0, %s21
      %p18 = scmp.ge.s32.totalorder %s17, 4
      %s24 = sphi 0, %s36
      %s25 = sphi 0, %s32
      %s26 = sphi 0, %s24
      %s27 = sphi 0, %s25
      %s28 = sphi 0, %s26
      %s29 = sphi 0, %s27
      %s41 = sphi 0, %s43
      %s44 = sphi 0, %s41
      %s45 = sphi 0, %s44
      %s61 = sphi 0, %s45
      %s65 = sphi 0, %s65
      %s67 = sphi 0, %s65
      %s68 = sphi 0, %s67
      %s82 = sphi 0, %s68
      %s86 = sphi 0, %s86
      %s88 = sphi 0, %s86
      %s89 = sphi 0, %s88
      %s103 = sphi 0, %s89
      %s111 = sphi 0, %s113
      %s114 = sphi 0, %s111
      %s115 = sphi 0, %s114
      %s131 = sphi 0, %s115
    $region4: #{tpu_custom_call.1} parent=1 // loop_header_branch
      %20 = sbr.rel (%p18) target = $region8
    $region5: #{tpu_custom_call.1} parent=1 // loop_body
      %s22 = ssub.s32 %s17, 1
      %s23 = ssub.s32 %s17, 2
      %s30 = sadd.s32 1, %s25
      %p31 = scmp.ge.s32.totalorder %s30, 1
      %s32 = scalar_select %p31, 0, %s30
      %s33 = sadd.s32 1, %s24
      %s34 = scalar_select %p31, %s33, %s24
      %p35 = scmp.ge.s32.totalorder %s34, 2
      %s36 = scalar_select %p35, 0, %s34
      %s37 = ssub.s32 %s24, %s36
      %s38 = ssub.s32 %s25, %s32
      %s39 = sor.u32 %s37, %s38
      %p40 = scmp.eq.s32.totalorder %s39, 0
      %s42 = sadd.s32 %s41, 1
      %s43 = scalar_select %p40, %s41, %s42
      %p46 = pneg %p40
      %p47 = scmp.eq.s32.totalorder %s17, 1
      %p48 = por %p46, %p47
      %p49 = scmp.ne.s32.totalorder %s41, %s44
      %p50 = scmp.eq.s32.totalorder %s17, 0
      %p51 = por %p49, %p50
      %p52 = scmp.ne.s32.totalorder %s41, %s44
      %p53 = scmp.eq.s32.totalorder %s22, 1
      %p54 = por %p52, %p53
      %p55 = scmp.ne.s32.totalorder %s44, %s45
      %p56 = scmp.eq.s32.totalorder %s22, 0
      %p57 = por %p55, %p56
      %p58 = scmp.ne.s32.totalorder %s44, %s45
      %p59 = scmp.eq.s32.totalorder %s23, 1
      %p60 = por %p58, %p59
      %p62 = scmp.ne.s32.totalorder %s45, %s61
      %p63 = scmp.eq.s32.totalorder %s23, 0
      %p64 = por %p62, %p63
      %s66 = sadd.s32 %s65, 1
      %p69 = scmp.eq.s32.totalorder %s17, 1
      %p70 = scmp.ne.s32.totalorder %s65, %s67
      %p71 = scmp.eq.s32.totalorder %s17, 0
      %p72 = por %p70, %p71
      %p73 = scmp.ne.s32.totalorder %s65, %s67
      %p74 = scmp.eq.s32.totalorder %s22, 1
      %p75 = por %p73, %p74
      %p76 = scmp.ne.s32.totalorder %s67, %s68
      %p77 = scmp.eq.s32.totalorder %s22, 0
      %p78 = por %p76, %p77
      %p79 = scmp.ne.s32.totalorder %s67, %s68
      %p80 = scmp.eq.s32.totalorder %s23, 1
      %p81 = por %p79, %p80
      %p83 = scmp.ne.s32.totalorder %s68, %s82
      %p84 = scmp.eq.s32.totalorder %s23, 0
      %p85 = por %p83, %p84
      %s87 = sadd.s32 %s86, 1
      %p90 = scmp.eq.s32.totalorder %s17, 1
      %p91 = scmp.ne.s32.totalorder %s86, %s88
      %p92 = scmp.eq.s32.totalorder %s17, 0
      %p93 = por %p91, %p92
      %p94 = scmp.ne.s32.totalorder %s86, %s88
      %p95 = scmp.eq.s32.totalorder %s22, 1
      %p96 = por %p94, %p95
      %p97 = scmp.ne.s32.totalorder %s88, %s89
      %p98 = scmp.eq.s32.totalorder %s22, 0
      %p99 = por %p97, %p98
      %p100 = scmp.ne.s32.totalorder %s88, %s89
      %p101 = scmp.eq.s32.totalorder %s23, 1
      %p102 = por %p100, %p101
      %p104 = scmp.ne.s32.totalorder %s89, %s103
      %p105 = scmp.eq.s32.totalorder %s23, 0
      %p106 = por %p104, %p105
      %s107 = ssub.s32 %s24, %s36
      %s108 = ssub.s32 %s25, %s32
      %s109 = sor.u32 %s107, %s108
      %p110 = scmp.eq.s32.totalorder %s109, 0
      %s112 = sadd.s32 %s111, 1
      %s113 = scalar_select %p110, %s111, %s112
      %p116 = pneg %p110
      %p117 = scmp.eq.s32.totalorder %s17, 1
      %p118 = por %p116, %p117
      %p119 = scmp.ne.s32.totalorder %s111, %s114
      %p120 = scmp.eq.s32.totalorder %s17, 0
      %p121 = por %p119, %p120
      %p122 = scmp.ne.s32.totalorder %s111, %s114
      %p123 = scmp.eq.s32.totalorder %s22, 1
      %p124 = por %p122, %p123
      %p125 = scmp.ne.s32.totalorder %s114, %s115
      %p126 = scmp.eq.s32.totalorder %s22, 0
      %p127 = por %p125, %p126
      %p128 = scmp.ne.s32.totalorder %s114, %s115
      %p129 = scmp.eq.s32.totalorder %s23, 1
      %p130 = por %p128, %p129
      %p132 = scmp.ne.s32.totalorder %s115, %s131
      %p133 = scmp.eq.s32.totalorder %s23, 0
      %p134 = por %p132, %p133
      %p135 = scmp.le.s32.totalorder 1, %s17
      %p136 = scmp.lt.s32.totalorder %s17, 3
      %p137 = pnand %p135, %p136
      %p138 = pneg %p137
      // Predicated region
      $region9: #{tpu_custom_call.1} parent=5 // pred_check
        _
      $region10: #{tpu_custom_call.1} parent=5 // pred_check_branch
        %140 = sbr.rel (%p137) target = $region12
      $region11: #{tpu_custom_call.1} parent=5 // pred_region
        %s141 = ssub.s32 %s17, 1
        // Predicated region
        $region13: #{tpu_custom_call.1} parent=11 // pred_check
          %p142 = pneg %p78
        $region14: #{tpu_custom_call.1} parent=11 // pred_check_branch
          %144 = sbr.rel (%p142) target = $region16
        $region15: #{tpu_custom_call.1} parent=11 // pred_region
          %s146 = ssub.s32 64, 64
          %147 = vsyncadd [#allocation5], %s146
          %150 = dma.hbm_to_smem %s1, 64, [#allocation7], [#allocation5]
        $region16: #{tpu_custom_call.1} parent=11 // pred_fallthru
          _
        // Predicated region
        $region17: #{tpu_custom_call.1} parent=11 // pred_check
          %p151 = pneg %p99
        $region18: #{tpu_custom_call.1} parent=11 // pred_check_branch
          %153 = sbr.rel (%p151) target = $region20
        $region19: #{tpu_custom_call.1} parent=11 // pred_region
          %s155 = ssub.s32 16, 16
          %156 = vsyncadd [#allocation6], %s155
          %s158 = sshll.u32 %s2, 4
          %s159 = int_to_ptr.vmem [resolvable:$true] %s158
          %161 = dma.vmem_to_smem %s159, 16, [#allocation8], [#allocation6]
        $region20: #{tpu_custom_call.1} parent=11 // pred_fallthru
          _
      $region12: #{tpu_custom_call.1} parent=5 // pred_fallthru
        _
      %p162 = scmp.lt.s32.totalorder %s17, 2
      // Predicated region
      $region21: #{tpu_custom_call.1} parent=5 // pred_check
        %p163 = pneg %p162
      $region22: #{tpu_custom_call.1} parent=5 // pred_check_branch
        %165 = sbr.rel (%p163) target = $region24
      $region23: #{tpu_custom_call.1} parent=5 // pred_region
        // Predicated region
        $region25: #{tpu_custom_call.1} parent=23 // pred_check
          %p166 = pneg %p51
        $region26: #{tpu_custom_call.1} parent=23 // pred_check_branch
          %168 = sbr.rel (%p166) target = $region28
        $region27: #{tpu_custom_call.1} parent=23 // pred_region
          %s169 = sand.u32 %s41, 1
          %s170 = scalar_lea.sflag [#allocation3], %s169
          %s171 = sand.u32 %s41, 1
          %s172 = smul.addr %s171, 8
          %s173 = scalar_lea.vmem [#allocation2], %s172
          %s175 = ssub.s32 128, 128
          %176 = vsyncadd %s170, %s175
          %s177 = smul.addr %s24, 4
          %s178 = sadd.s32 %s25, %s177
          %s179 = smul.addr %s178, 32
          %s180 = scalar_lea.hbm %s0, %s179
          %s181 = sshll.u32 %s173, 4
          %s182 = int_to_ptr.vmem [resolvable:$true] %s181
          %187 = dma.hbm_to_vmem [thread:$0]  %s180, 128, %s182, %s170, 32, 32, 2
        $region28: #{tpu_custom_call.1} parent=23 // pred_fallthru
          _
      $region24: #{tpu_custom_call.1} parent=5 // pred_fallthru
        _
      %p188 = scmp.le.s32.totalorder 1, %s17
      %p189 = scmp.lt.s32.totalorder %s17, 3
      %p190 = pnand %p188, %p189
      %p191 = pneg %p190
      // Predicated region
      $region29: #{tpu_custom_call.1} parent=5 // pred_check
        _
      $region30: #{tpu_custom_call.1} parent=5 // pred_check_branch
        %193 = sbr.rel (%p190) target = $region32
      $region31: #{tpu_custom_call.1} parent=5 // pred_region
        %s194 = ssub.s32 %s17, 1
        %s195 = sand.u32 %s44, 1
        %s196 = scalar_lea.sflag [#allocation3], %s195
        %s197 = sand.u32 %s44, 1
        %s198 = smul.addr %s197, 8
        %s199 = scalar_lea.vmem [#allocation2], %s198
        // Predicated region
        $region33: #{tpu_custom_call.1} parent=31 // pred_check
          %p200 = pneg %p57
        $region34: #{tpu_custom_call.1} parent=31 // pred_check_branch
          %202 = sbr.rel (%p200) target = $region36
        $region35: #{tpu_custom_call.1} parent=31 // pred_region
          %203 = dma.done %s196, 128
        $region36: #{tpu_custom_call.1} parent=31 // pred_fallthru
          _
        // Predicated region
        $region37: #{tpu_custom_call.1} parent=31 // pred_check
          %p204 = pneg %p78
        $region38: #{tpu_custom_call.1} parent=31 // pred_check_branch
          %206 = sbr.rel (%p204) target = $region40
        $region39: #{tpu_custom_call.1} parent=31 // pred_region
          %207 = dma.done [#allocation5], 64
        $region40: #{tpu_custom_call.1} parent=31 // pred_fallthru
          _
        // Predicated region
        $region41: #{tpu_custom_call.1} parent=31 // pred_check
          %p208 = pneg %p99
        $region42: #{tpu_custom_call.1} parent=31 // pred_check_branch
          %210 = sbr.rel (%p208) target = $region44
        $region43: #{tpu_custom_call.1} parent=31 // pred_region
          %211 = dma.done [#allocation6], 16
        $region44: #{tpu_custom_call.1} parent=31 // pred_fallthru
          _
        %212 = sfence
        %s213 = sand.u32 %s44, 1
        %s214 = scalar_lea.sflag [#allocation3], %s213
        %s215 = sand.u32 %s44, 1
        %s216 = smul.addr %s215, 8
        %s217 = scalar_lea.vmem [#allocation2], %s216
        %p218 = pneg %p57
        %p219 = pneg %p54
        %p220 = pneg %p78
        %p221 = pneg %p75
        %p222 = pneg %p99
        %p223 = pneg %p96
        %p224 = pneg %p127
        %p225 = pneg %p124
        %s226 = sand.u32 %s114, 1
        %s227 = scalar_lea.sflag [#allocation4], %s226
        %s228 = sand.u32 %s114, 1
        %s229 = smul.addr %s228, 8
        %s230 = scalar_lea.vmem [#allocation9], %s229
        %v231 = vld [vmem:[%s199] sm:$0x3]
        %v232 = vld [vmem:[%s199 + $0x2] sm:$0x3]
        %v233 = vld [vmem:[%s199 + $0x4] sm:$0x3]
        %v234 = vld [vmem:[%s199 + $0x6] sm:$0x3]
        %v235 = vmul.f32 %v231, %v231
        %v236 = vmul.f32 %v232, %v232
        %v237 = vmul.f32 %v233, %v233
        %v238 = vmul.f32 %v234, %v234
        %s239 = sld [smem:[#allocation7]]
        %v240 = vstv %s239
        %v241 = vmul.f32 %v235, %v240
        %s242 = sld [smem:[#allocation7 + $0x1]]
        %v243 = vstv %s242
        %v244 = vmul.f32 %v236, %v243
        %v245 = vadd.f32 %v241, %v244
        %s246 = sld [smem:[#allocation7 + $0x2]]
        %v247 = vstv %s246
        %v248 = vmul.f32 %v237, %v247
        %v249 = vadd.f32 %v245, %v248
        %s250 = sld [smem:[#allocation7 + $0x3]]
        %v251 = vstv %s250
        %v252 = vmul.f32 %v238, %v251
        %v253 = vadd.f32 %v249, %v252
        %s254 = sld [smem:[#allocation8]]
        %v255 = vstv %s254
        %v256 = vadd.f32 %v253, %v255
        %v257 = vrsqrt.pop %v256
        %v258 = vmul.f32 %v231, %v257
        %259 = vst [vmem:[%s230] sm:$0x3] %v258
        %s260 = sld [smem:[#allocation7 + $0x80]]
        %v261 = vstv %s260
        %v262 = vmul.f32 %v235, %v261
        %s263 = sld [smem:[#allocation7 + $0x81]]
        %v264 = vstv %s263
        %v265 = vmul.f32 %v236, %v264
        %v266 = vadd.f32 %v262, %v265
        %s267 = sld [smem:[#allocation7 + $0x82]]
        %v268 = vstv %s267
        %v269 = vmul.f32 %v237, %v268
        %v270 = vadd.f32 %v266, %v269
        %s271 = sld [smem:[#allocation7 + $0x83]]
        %v272 = vstv %s271
        %v273 = vmul.f32 %v238, %v272
        %v274 = vadd.f32 %v270, %v273
        %s275 = sld [smem:[#allocation8 + $0x1]]
        %v276 = vstv %s275
        %v277 = vadd.f32 %v274, %v276
        %v278 = vrsqrt.pop %v277
        %v279 = vmul.f32 %v232, %v278
        %s280 = scalar_lea.vmem %s230, 2 [#allocation9]
        %281 = vst [vmem:[%s280] sm:$0x3] %v279
        %s282 = sld [smem:[#allocation7 + $0x100]]
        %v283 = vstv %s282
        %v284 = vmul.f32 %v235, %v283
        %s285 = sld [smem:[#allocation7 + $0x101]]
        %v286 = vstv %s285
        %v287 = vmul.f32 %v236, %v286
        %v288 = vadd.f32 %v284, %v287
        %s289 = sld [smem:[#allocation7 + $0x102]]
        %v290 = vstv %s289
        %v291 = vmul.f32 %v237, %v290
        %v292 = vadd.f32 %v288, %v291
        %s293 = sld [smem:[#allocation7 + $0x103]]
        %v294 = vstv %s293
        %v295 = vmul.f32 %v238, %v294
        %v296 = vadd.f32 %v292, %v295
        %s297 = sld [smem:[#allocation8 + $0x2]]
        %v298 = vstv %s297
        %v299 = vadd.f32 %v296, %v298
        %v300 = vrsqrt.pop %v299
        %v301 = vmul.f32 %v233, %v300
        %s302 = scalar_lea.vmem %s230, 4 [#allocation9]
        %303 = vst [vmem:[%s302] sm:$0x3] %v301
        %s304 = sld [smem:[#allocation7 + $0x180]]
        %v305 = vstv %s304
        %v306 = vmul.f32 %v235, %v305
        %s307 = sld [smem:[#allocation7 + $0x181]]
        %v308 = vstv %s307
        %v309 = vmul.f32 %v236, %v308
        %v310 = vadd.f32 %v306, %v309
        %s311 = sld [smem:[#allocation7 + $0x182]]
        %v312 = vstv %s311
        %v313 = vmul.f32 %v237, %v312
        %v314 = vadd.f32 %v310, %v313
        %s315 = sld [smem:[#allocation7 + $0x183]]
        %v316 = vstv %s315
        %v317 = vmul.f32 %v238, %v316
        %v318 = vadd.f32 %v314, %v317
        %s319 = sld [smem:[#allocation8 + $0x3]]
        %v320 = vstv %s319
        %v321 = vadd.f32 %v318, %v320
        %v322 = vrsqrt.pop %v321
        %v323 = vmul.f32 %v234, %v322
        %s324 = scalar_lea.vmem %s230, 6 [#allocation9]
        %325 = vst [vmem:[%s324] sm:$0x3] %v323
        %s326 = sand.u32 %s114, 1
        %s327 = scalar_lea.sflag [#allocation4], %s326
        %s328 = sand.u32 %s114, 1
        %s329 = smul.addr %s328, 8
        %s330 = scalar_lea.vmem [#allocation9], %s329
        // Predicated region
        $region45: #{tpu_custom_call.1} parent=31 // pred_check
          %p331 = pneg %p124
        $region46: #{tpu_custom_call.1} parent=31 // pred_check_branch
          %333 = sbr.rel (%p331) target = $region48
        $region47: #{tpu_custom_call.1} parent=31 // pred_region
          %s335 = ssub.s32 128, 128
          %336 = vsyncadd %s327, %s335
          %s337 = smul.addr %s26, 4
          %s338 = sadd.s32 %s27, %s337
          %s339 = smul.addr %s338, 32
          %s340 = scalar_lea.hbm %s3, %s339
          %s341 = sshll.u32 %s330, 4
          %s342 = int_to_ptr.vmem [resolvable:$true] %s341
          %347 = dma.vmem_to_hbm [thread:$0]  %s342, 128, %s340, %s327, 32, 32, 2
        $region48: #{tpu_custom_call.1} parent=31 // pred_fallthru
          _
      $region32: #{tpu_custom_call.1} parent=5 // pred_fallthru
        _
      %p348 = scmp.le.s32.totalorder 2, %s17
      // Predicated region
      $region49: #{tpu_custom_call.1} parent=5 // pred_check
        %p349 = pneg %p348
      $region50: #{tpu_custom_call.1} parent=5 // pred_check_branch
        %351 = sbr.rel (%p349) target = $region52
      $region51: #{tpu_custom_call.1} parent=5 // pred_region
        %s352 = ssub.s32 %s17, 2
        // Predicated region
        $region53: #{tpu_custom_call.1} parent=51 // pred_check
          %p353 = pneg %p130
        $region54: #{tpu_custom_call.1} parent=51 // pred_check_branch
          %355 = sbr.rel (%p353) target = $region56
        $region55: #{tpu_custom_call.1} parent=51 // pred_region
          %s356 = sand.u32 %s115, 1
          %s357 = scalar_lea.sflag [#allocation4], %s356
          %s358 = sand.u32 %s115, 1
          %s359 = smul.addr %s358, 8
          %s360 = scalar_lea.vmem [#allocation9], %s359
          %361 = dma.done %s357, 128
        $region56: #{tpu_custom_call.1} parent=51 // pred_fallthru
          _
      $region52: #{tpu_custom_call.1} parent=5 // pred_fallthru
        _
    $region6: #{tpu_custom_call.1} parent=1 // loop_footer
      %s21 = sadd.s32 1, %s17
    $region7: #{tpu_custom_call.1} parent=1 // loop_footer_branch
      %16 = sbr.rel target = $region3
    $region8: #{tpu_custom_call.1} parent=1 // loop_exit
      _
    %362 = vsyncpa [#allocation3], 1
    %s363 = scalar_lea.sflag [#allocation3], 1
    %364 = vsyncpa %s363, 1
    %365 = vsyncpa [#allocation4], 1
    %s366 = scalar_lea.sflag [#allocation4], 1
    %367 = vsyncpa %s366, 1
    %368 = vsyncpa [#allocation5], 1
    %s369 = scalar_lea.sflag [#allocation5], 1
    %370 = vsyncpa %s369, 1
    %371 = vsyncpa [#allocation6], 1
    %s372 = scalar_lea.sflag [#allocation6], 1
    %373 = vsyncpa %s372, 1

</llo_original>
